<compile_context>
chip_gen: v7x
topology: tpu7x:2x2x1
jax: 0.10.0
libtpu: 0.0.40
codegen_flags: <defaults>
</compile_context>

<pallas_src>
import functools

import jax
import jax.numpy as jnp
from jax.experimental import pallas as pl
from jax.experimental.pallas import tpu as pltpu

HEAD_DIM = 64
LN_EPS = 1e-5
QK_SCALE = 1.0 / (HEAD_DIM ** 0.5)   # folded into q once, in Kernel A


# --------------------------------------------------------------------------
# Per-generation tuning
# --------------------------------------------------------------------------
def _detect_generation():
    """Return (vmem_limit_bytes or None, exp_dtype, tq_target, tkv_target, tr_target)."""
    try:
        kind = jax.devices()[0].device_kind.lower()
    except Exception:
        kind = ""
    if "v7" in kind:
        # 64 MiB physical VMEM -> hard 48 MiB ceiling, modest tiles; bf16 EUP ok.
        return 48 * 2 ** 20, jnp.bfloat16, 256, 256, 256
    if "v6" in kind:
        # 128 MiB VMEM; ~650 flops/byte roofline -> big q tiles pay off; bf16 EUP.
        return 100 * 2 ** 20, jnp.bfloat16, 512, 512, 512
    if "v5e" in kind or "v5 lite" in kind:
        # 128 MiB VMEM; tq=256 already MXU-bound; no bf16 EUP on v5e.
        return 100 * 2 ** 20, jnp.float32, 256, 512, 512
    # Unknown chip: conservative (compiler-default VMEM limit, f32 exp).
    return None, jnp.float32, 256, 256, 512


def _compiler_params(dims, vmem_limit):
    kw = dict(dimension_semantics=dims)
    if vmem_limit is not None:
        kw["vmem_limit_bytes"] = vmem_limit
    return pltpu.CompilerParams(**kw)


def _largest_tile(n, target):
    """Largest divisor of n that is <= target and a multiple of 8.

    Falls back to the full dimension (always legal as a full-extent block,
    but can inflate VMEM for very large awkward sizes)."""
    if n <= target:
        return n
    for t in range(target, 7, -1):
        if n % t == 0 and t % 8 == 0:
            return t
    return n


def _pick_head_group(nh):
    """Head-group size HG: divides nh, and HG*64 is lane-dense (mult. of 128)
    unless HG == nh (then it equals C, which is also a legal full block)."""
    for hg in (8, 6, 4, 2):
        if nh % hg == 0:
            return hg
    return nh


def _layer_norm(x, w, b):
    """Single-pass LayerNorm (E[x^2] - E[x]^2), f32. x: (rows, C); w, b: (1, C).
    (Two-pass variance would be marginally more accurate for large-mean inputs.)"""
    mu = jnp.mean(x, axis=-1, keepdims=True)
    ms = jnp.mean(x * x, axis=-1, keepdims=True)
    var = jnp.maximum(ms - mu * mu, 0.0)
    return (x - mu) * jax.lax.rsqrt(var + LN_EPS) * w + b


# --------------------------------------------------------------------------
# Kernel A: LN1 + fused QKV projection (rows = flattened B*S tokens)
# q is pre-scaled by 1/sqrt(HEAD_DIM) here so Kernel B never scales scores.
# --------------------------------------------------------------------------
def ln_qkv_kernel(x_ref, ln1w_ref, ln1b_ref, wqkv_ref, bqkv_ref,
                  q_ref, k_ref, v_ref):
    C = x_ref.shape[1]
    x = x_ref[...].astype(jnp.float32)                      # (tr, C)
    h = _layer_norm(x, ln1w_ref[...], ln1b_ref[...])
    qkv = jnp.dot(h.astype(jnp.bfloat16), wqkv_ref[...],
                  preferred_element_type=jnp.float32) + bqkv_ref[...]
    q_ref[...] = (qkv[:, 0 * C:1 * C] * QK_SCALE).astype(q_ref.dtype)
    k_ref[...] = qkv[:, 1 * C:2 * C].astype(k_ref.dtype)
    v_ref[...] = qkv[:, 2 * C:3 * C].astype(v_ref.dtype)


# --------------------------------------------------------------------------
# Kernel B: flash attention. grid = (B, nh//HG, q-tiles, kv-tiles), kv innermost.
# q/k/v blocks: (1, HG, tile, 64) bf16; online softmax state in VMEM scratch.
# Output written lane-dense as (1, tq, HG*64) blocks of a (B, S, C) tensor.
# --------------------------------------------------------------------------
def flash_attn_kernel(q_ref, k_ref, v_ref, o_ref, m_ref, l_ref, acc_ref,
                      *, exp_dtype):
    ki = pl.program_id(3)

    @pl.when(ki == 0)
    def _init():
        m_ref[...] = jnp.full(m_ref.shape, -jnp.inf, dtype=m_ref.dtype)
        l_ref[...] = jnp.zeros(l_ref.shape, dtype=l_ref.dtype)
        acc_ref[...] = jnp.zeros(acc_ref.shape, dtype=acc_ref.dtype)

    q = q_ref[0]                                            # (HG, tq, hd) bf16, pre-scaled
    k = k_ref[0]                                            # (HG, tk, hd) bf16
    v = v_ref[0]                                            # (HG, tk, hd) bf16

    # Batched-heads QK^T on the MXU, f32 accumulation. No score scaling needed.
    s = jnp.einsum('hqd,hkd->hqk', q, k,
                   preferred_element_type=jnp.float32)      # (HG, tq, tk)

    m_prev = m_ref[...]
    m_new = jnp.maximum(m_prev, jnp.max(s, axis=-1, keepdims=True))
    alpha = jnp.exp(m_prev - m_new)                         # small, f32
    # Big exp: bf16 on v6e/v7x (2x EUP), f32 on v5e/unknown; m/l stay f32.
    p = jnp.exp((s - m_new).astype(exp_dtype))
    l_ref[...] = alpha * l_ref[...] + jnp.sum(p.astype(jnp.float32),
                                              axis=-1, keepdims=True)
    acc_ref[...] = alpha * acc_ref[...] + jnp.einsum(
        'hqk,hkd->hqd', p.astype(v.dtype), v, preferred_element_type=jnp.float32)
    m_ref[...] = m_new

    @pl.when(ki == pl.num_programs(3) - 1)
    def _finalize():
        hg, tq, hd = acc_ref.shape
        inv_l = pl.reciprocal(l_ref[...], approx=True)      # EUP, near free
        out = acc_ref[...] * inv_l                          # (HG, tq, hd) f32
        # One XLU transpose per q tile -> lane-dense (tq, HG*64) store.
        out = jnp.transpose(out, (1, 0, 2)).reshape(tq, hg * hd)
        o_ref[0] = out.astype(o_ref.dtype)


# --------------------------------------------------------------------------
# Kernel C: attention output projection + residual + LN2 + MLP + residual
# (rows = flattened B*S tokens; (tile, 4C) MLP intermediate stays bounded)
# --------------------------------------------------------------------------
def attn_out_mlp_kernel(attn_ref, xres_ref, wo_ref, bo_ref, ln2w_ref, ln2b_ref,
                        w1_ref, b1_ref, w2_ref, b2_ref, o_ref):
    x = xres_ref[...].astype(jnp.float32)                   # (tr, C)
    a = jnp.dot(attn_ref[...], wo_ref[...],
                preferred_element_type=jnp.float32) + bo_ref[...]
    x1 = x + a                                              # residual 1 (f32)

    h2 = _layer_norm(x1, ln2w_ref[...], ln2b_ref[...])
    mid = jnp.dot(h2.astype(jnp.bfloat16), w1_ref[...],
                  preferred_element_type=jnp.float32) + b1_ref[...]
    mid = mid * jax.nn.sigmoid(mid)                         # SiLU in f32
    y = jnp.dot(mid.astype(jnp.bfloat16), w2_ref[...],
                preferred_element_type=jnp.float32) + b2_ref[...]
    o_ref[...] = (x1 + y).astype(o_ref.dtype)               # residual 2


# --------------------------------------------------------------------------
# Wrapper
# --------------------------------------------------------------------------
def sana_attn(x_nchw, params):
    """x_nchw: (B, C, H, W) f32. Returns (B, C, H, W) f32."""
    B, C, H, W = x_nchw.shape
    assert C % HEAD_DIM == 0, "channels must be a multiple of 64 (head dim)"
    S = H * W
    N = B * S
    nh = C // HEAD_DIM

    vmem_limit, exp_dtype, tq_t, tkv_t, tr_t = _detect_generation()

    (ln1w, ln1b, wqkv, bqkv, wo, bo, ln2w, ln2b, w1, b1, w2, b2) = params
    # bf16 weights once in the wrapper: MXU-native operands, half the DMA bytes.
    wqkv_b = wqkv.astype(jnp.bfloat16)
    wo_b = wo.astype(jnp.bfloat16)
    w1_b = w1.astype(jnp.bfloat16)
    w2_b = w2.astype(jnp.bfloat16)

    # NCHW -> token-major (B, S, C) with channels on the lane dim.
    x_seq = jnp.transpose(x_nchw, (0, 2, 3, 1)).reshape(B, S, C)
    x2d = x_seq.reshape(N, C)

    tr = _largest_tile(N, tr_t)      # row tile for projection / MLP kernels
    tq = _largest_tile(S, tq_t)      # query tile for attention
    tkv = _largest_tile(S, tkv_t)    # kv tile for attention
    hg = _pick_head_group(nh)        # heads per attention program
    ng = nh // hg

    row_spec = pl.BlockSpec((tr, C), lambda i: (i, 0))

    def const_spec(shape):
        # Constant-index weight block: fetched once; single-buffered to halve
        # its VMEM footprint (key for v7x's 64 MiB VMEM at large C).
        return pl.BlockSpec(shape, lambda i: (0, 0), pipeline_mode=pl.Buffered(1))

    # ---- Kernel A: LN1 + QKV (batch folded into token axis) ----
    q2d, k2d, v2d = pl.pallas_call(
        ln_qkv_kernel,
        out_shape=tuple(jax.ShapeDtypeStruct((N, C), jnp.bfloat16) for _ in range(3)),
        grid=(N // tr,),
        in_specs=[
            row_spec,
            const_spec((1, C)), const_spec((1, C)),
            const_spec((C, 3 * C)), const_spec((1, 3 * C)),
        ],
        out_specs=(row_spec, row_spec, row_spec),
        compiler_params=_compiler_params(("parallel",), vmem_limit),
    )(x2d, ln1w, ln1b, wqkv_b, bqkv)

    # Head-major layout for q/k/v (layout plumbing in XLA, outside kernels).
    def to_heads(t2d):
        return t2d.reshape(B, S, nh, HEAD_DIM).transpose(0, 2, 1, 3)

    qh, kh, vh = to_heads(q2d), to_heads(k2d), to_heads(v2d)

    q_spec = pl.BlockSpec((1, hg, tq, HEAD_DIM), lambda b, g, qi, ki: (b, g, qi, 0))
    kv_spec = pl.BlockSpec((1, hg, tkv, HEAD_DIM), lambda b, g, qi, ki: (b, g, ki, 0))
    o_spec = pl.BlockSpec((1, tq, hg * HEAD_DIM), lambda b, g, qi, ki: (b, qi, g))

    # ---- Kernel B: flash attention, lane-dense (B, S, C) output ----
    attn_bsc = pl.pallas_call(
        functools.partial(flash_attn_kernel, exp_dtype=exp_dtype),
        out_shape=jax.ShapeDtypeStruct((B, S, C), jnp.bfloat16),
        grid=(B, ng, S // tq, S // tkv),
        in_specs=[q_spec, kv_spec, kv_spec],
        out_specs=o_spec,
        scratch_shapes=[
            pltpu.VMEM((hg, tq, 1), jnp.float32),          # running max
            pltpu.VMEM((hg, tq, 1), jnp.float32),          # running denom
            pltpu.VMEM((hg, tq, HEAD_DIM), jnp.float32),   # accumulator
        ],
        compiler_params=_compiler_params(
            ("parallel", "parallel", "parallel", "arbitrary"), vmem_limit),
    )(qh, kh, vh)

    attn2d = attn_bsc.reshape(N, C)   # free reshape; channel order already head-major

    # ---- Kernel C: wo projection + residual + LN2 + MLP + residual ----
    y2d = pl.pallas_call(
        attn_out_mlp_kernel,
        out_shape=jax.ShapeDtypeStruct((N, C), x2d.dtype),
        grid=(N // tr,),
        in_specs=[
            row_spec, row_spec,
            const_spec((C, C)), const_spec((1, C)),
            const_spec((1, C)), const_spec((1, C)),
            const_spec((C, 4 * C)), const_spec((1, 4 * C)),
            const_spec((4 * C, C)), const_spec((1, C)),
        ],
        out_specs=row_spec,
        compiler_params=_compiler_params(("parallel",), vmem_limit),
    )(attn2d, x2d, wo_b, bo, ln2w, ln2b, w1_b, b1, w2_b, b2)

    return jnp.transpose(y2d.reshape(B, H, W, C), (0, 3, 1, 2))


# --------------------------------------------------------------------------
# Parameters + pure-JAX reference for a correctness sanity check
# --------------------------------------------------------------------------
def make_params(key, C):
    """Deterministic synthetic parameters. Linear weights stored as (in, out)."""
    keys = jax.random.split(key, 8)
    init = lambda k, shape: (0.02 * jax.random.normal(k, shape)).astype(jnp.float32)
    ln1w = jnp.ones((1, C), jnp.float32)
    ln1b = jnp.zeros((1, C), jnp.float32)
    ln2w = jnp.ones((1, C), jnp.float32)
    ln2b = jnp.zeros((1, C), jnp.float32)
    wqkv = init(keys[0], (C, 3 * C))
    bqkv = init(keys[1], (1, 3 * C))
    wo = init(keys[2], (C, C))
    bo = init(keys[3], (1, C))
    w1 = init(keys[4], (C, 4 * C))
    b1 = init(keys[5], (1, 4 * C))
    w2 = init(keys[6], (4 * C, C))
    b2 = init(keys[7], (1, C))
    return (ln1w, ln1b, wqkv, bqkv, wo, bo, ln2w, ln2b, w1, b1, w2, b2)


def _reference(x_nchw, params):
    """Pure-JAX f32 reference of the SanaAttn forward."""
    B, C, H, W = x_nchw.shape
    S = H * W
    nh = C // HEAD_DIM
    (ln1w, ln1b, wqkv, bqkv, wo, bo, ln2w, ln2b, w1, b1, w2, b2) = params

    def ln(v, w_, b_):
        mu = jnp.mean(v, -1, keepdims=True)
        var = jnp.mean((v - mu) ** 2, -1, keepdims=True)
        return (v - mu) / jnp.sqrt(var + LN_EPS) * w_ + b_

    x = jnp.transpose(x_nchw, (0, 2, 3, 1)).reshape(B, S, C)
    h = ln(x, ln1w, ln1b)
    qkv = h @ wqkv + bqkv
    q, k, v = qkv[..., :C], qkv[..., C:2 * C], qkv[..., 2 * C:]
    q = q.reshape(B, S, nh, HEAD_DIM).transpose(0, 2, 1, 3)
    k = k.reshape(B, S, nh, HEAD_DIM).transpose(0, 2, 1, 3)
    v = v.reshape(B, S, nh, HEAD_DIM).transpose(0, 2, 1, 3)
    s = jnp.einsum('bhqd,bhkd->bhqk', q, k) / (HEAD_DIM ** 0.5)
    p = jax.nn.softmax(s, axis=-1)
    a = jnp.einsum('bhqk,bhkd->bhqd', p, v)
    a = a.transpose(0, 2, 1, 3).reshape(B, S, C)
    x = x + a @ wo + bo
    h2 = ln(x, ln2w, ln2b)
    m = h2 @ w1 + b1
    m = m * jax.nn.sigmoid(m)
    x = x + m @ w2 + b2
    return jnp.transpose(x.reshape(B, H, W, C), (0, 3, 1, 2))


if __name__ == "__main__":
    key = jax.random.PRNGKey(0)
    k_x, k_p = jax.random.split(key)

    # ch must be a multiple of 64 (n_heads = ch // 64). Smallest TPU-friendly: 128.
    B, C, H, W = 2, 128, 8, 8
    x = jax.random.normal(k_x, (B, C, H, W), dtype=jnp.float32)
    params = make_params(k_p, C)

    y = sana_attn(x, params)
    jax.block_until_ready(y)
    assert y.shape == (B, C, H, W)

    y_ref = _reference(x, params)
    assert jnp.allclose(y, y_ref, atol=5e-2, rtol=5e-2), "kernel mismatch vs reference"

    print("KERNEL_OK")
</pallas_src>

<mosaic_0001>
module attributes {stable_mosaic.version = 11 : i64} {
  func.func @ln_qkv_kernel(%arg0: i32, %arg1: memref<128x128xf32, #tpu.memory_space<vmem>>, %arg2: memref<1x128xf32, #tpu.memory_space<vmem>>, %arg3: memref<1x128xf32, #tpu.memory_space<vmem>>, %arg4: memref<128x384xbf16, #tpu.memory_space<vmem>>, %arg5: memref<1x384xf32, #tpu.memory_space<vmem>>, %arg6: memref<128x128xbf16, #tpu.memory_space<vmem>>, %arg7: memref<128x128xbf16, #tpu.memory_space<vmem>>, %arg8: memref<128x128xbf16, #tpu.memory_space<vmem>>) attributes {dimension_semantics = [#tpu.dimension_semantics<parallel>], iteration_bounds = array<i64: 1>, scalar_prefetch = 0 : i64, scratch_operands = 0 : i64, tpu.core_type = #tpu.core_type<tc>, window_params = [{transform_indices = @transform_0, window_bounds = array<i64: 128, 128>}, {pipeline_mode = #tpu.pipeline_mode<synchronous>, transform_indices = @transform_1, window_bounds = array<i64: 1, 128>}, {pipeline_mode = #tpu.pipeline_mode<synchronous>, transform_indices = @transform_2, window_bounds = array<i64: 1, 128>}, {pipeline_mode = #tpu.pipeline_mode<synchronous>, transform_indices = @transform_3, window_bounds = array<i64: 128, 384>}, {pipeline_mode = #tpu.pipeline_mode<synchronous>, transform_indices = @transform_4, window_bounds = array<i64: 1, 384>}, {transform_indices = @transform_5, window_bounds = array<i64: 128, 128>}, {transform_indices = @transform_6, window_bounds = array<i64: 128, 128>}, {transform_indices = @transform_7, window_bounds = array<i64: 128, 128>}]} {
    %c0 = arith.constant 0 : index
    %c0_0 = arith.constant 0 : index
    %0 = vector.load %arg1[%c0, %c0_0] : memref<128x128xf32, #tpu.memory_space<vmem>>, vector<128x128xf32>
    %c0_1 = arith.constant 0 : index
    %c0_2 = arith.constant 0 : index
    %1 = vector.load %arg2[%c0_1, %c0_2] : memref<1x128xf32, #tpu.memory_space<vmem>>, vector<1x128xf32>
    %c0_3 = arith.constant 0 : index
    %c0_4 = arith.constant 0 : index
    %2 = vector.load %arg3[%c0_3, %c0_4] : memref<1x128xf32, #tpu.memory_space<vmem>>, vector<1x128xf32>
    %cst = arith.constant dense<0.000000e+00> : vector<128xf32>
    %3 = vector.multi_reduction <add>, %0, %cst [1] : vector<128x128xf32> to vector<128xf32>
    %4 = vector.shape_cast %3 : vector<128xf32> to vector<128x1xf32>
    %cst_5 = arith.constant 1.280000e+02 : f32
    %5 = vector.broadcast %cst_5 : f32 to vector<128x1xf32>
    %6 = arith.divf %4, %5 : vector<128x1xf32>
    %7 = arith.mulf %0, %0 : vector<128x128xf32>
    %cst_6 = arith.constant dense<0.000000e+00> : vector<128xf32>
    %8 = vector.multi_reduction <add>, %7, %cst_6 [1] : vector<128x128xf32> to vector<128xf32>
    %9 = vector.shape_cast %8 : vector<128xf32> to vector<128x1xf32>
    %cst_7 = arith.constant 1.280000e+02 : f32
    %10 = vector.broadcast %cst_7 : f32 to vector<128x1xf32>
    %11 = arith.divf %9, %10 : vector<128x1xf32>
    %12 = arith.mulf %6, %6 : vector<128x1xf32>
    %13 = arith.subf %11, %12 : vector<128x1xf32>
    %cst_8 = arith.constant 0.000000e+00 : f32
    %14 = vector.broadcast %cst_8 : f32 to vector<128x1xf32>
    %15 = arith.maximumf %13, %14 : vector<128x1xf32>
    %16 = vector.broadcast %6 : vector<128x1xf32> to vector<128x128xf32>
    %17 = arith.subf %0, %16 : vector<128x128xf32>
    %cst_9 = arith.constant 9.99999974E-6 : f32
    %18 = vector.broadcast %cst_9 : f32 to vector<128x1xf32>
    %19 = arith.addf %15, %18 : vector<128x1xf32>
    %20 = math.rsqrt %19 : vector<128x1xf32>
    %21 = vector.broadcast %20 : vector<128x1xf32> to vector<128x128xf32>
    %22 = arith.mulf %17, %21 : vector<128x128xf32>
    %23 = vector.broadcast %1 : vector<1x128xf32> to vector<128x128xf32>
    %24 = arith.mulf %22, %23 : vector<128x128xf32>
    %25 = vector.broadcast %2 : vector<1x128xf32> to vector<128x128xf32>
    %26 = arith.addf %24, %25 : vector<128x128xf32>
    %27 = arith.truncf %26 : vector<128x128xf32> to vector<128x128xbf16>
    %c0_10 = arith.constant 0 : index
    %c0_11 = arith.constant 0 : index
    %28 = vector.load %arg4[%c0_10, %c0_11] : memref<128x384xbf16, #tpu.memory_space<vmem>>, vector<128x384xbf16>
    %cst_12 = arith.constant dense<0.000000e+00> : vector<128x384xf32>
    %29 = tpu.matmul %27, %28, %cst_12 {dimension_numbers = #tpu.dot_dimension_numbers<[1], [0], [0], [1], [0, 0, 1, 1], [], []>} : vector<128x128xbf16>, vector<128x384xbf16>, vector<128x384xf32> -> vector<128x384xf32>
    %c0_13 = arith.constant 0 : index
    %c0_14 = arith.constant 0 : index
    %30 = vector.load %arg5[%c0_13, %c0_14] : memref<1x384xf32, #tpu.memory_space<vmem>>, vector<1x384xf32>
    %31 = vector.broadcast %30 : vector<1x384xf32> to vector<128x384xf32>
    %32 = arith.addf %29, %31 : vector<128x384xf32>
    %33 = vector.extract_strided_slice %32 {offsets = [0, 0], sizes = [128, 128], strides = [1, 1]} : vector<128x384xf32> to vector<128x128xf32>
    %cst_15 = arith.constant 1.250000e-01 : f32
    %34 = vector.broadcast %cst_15 : f32 to vector<128x128xf32>
    %35 = arith.mulf %33, %34 : vector<128x128xf32>
    %36 = arith.truncf %35 : vector<128x128xf32> to vector<128x128xbf16>
    %c0_16 = arith.constant 0 : index
    %c0_17 = arith.constant 0 : index
    %37 = vector.load %arg6[%c0_16, %c0_17] : memref<128x128xbf16, #tpu.memory_space<vmem>>, vector<128x128xbf16>
    tpu.vector_store %arg6[%c0_16, %c0_17], %36 {strides = array<i32>} : memref<128x128xbf16, #tpu.memory_space<vmem>>, vector<128x128xbf16>,
    %38 = vector.extract_strided_slice %32 {offsets = [0, 128], sizes = [128, 128], strides = [1, 1]} : vector<128x384xf32> to vector<128x128xf32>
    %39 = arith.truncf %38 : vector<128x128xf32> to vector<128x128xbf16>
    %c0_18 = arith.constant 0 : index
    %c0_19 = arith.constant 0 : index
    %40 = vector.load %arg7[%c0_18, %c0_19] : memref<128x128xbf16, #tpu.memory_space<vmem>>, vector<128x128xbf16>
    tpu.vector_store %arg7[%c0_18, %c0_19], %39 {strides = array<i32>} : memref<128x128xbf16, #tpu.memory_space<vmem>>, vector<128x128xbf16>,
    %41 = vector.extract_strided_slice %32 {offsets = [0, 256], sizes = [128, 128], strides = [1, 1]} : vector<128x384xf32> to vector<128x128xf32>
    %42 = arith.truncf %41 : vector<128x128xf32> to vector<128x128xbf16>
    %c0_20 = arith.constant 0 : index
    %c0_21 = arith.constant 0 : index
    %43 = vector.load %arg8[%c0_20, %c0_21] : memref<128x128xbf16, #tpu.memory_space<vmem>>, vector<128x128xbf16>
    tpu.vector_store %arg8[%c0_20, %c0_21], %42 {strides = array<i32>} : memref<128x128xbf16, #tpu.memory_space<vmem>>, vector<128x128xbf16>,
    return
  }
  func.func @transform_0(%arg0: i32) -> (i32, i32) {
    %c0_i32 = arith.constant 0 : i32
    %c0_i32_0 = arith.constant 0 : i32
    return %arg0, %c0_i32 : i32, i32
  }
  func.func @transform_1(%arg0: i32) -> (i32, i32) {
    %c0_i32 = arith.constant 0 : i32
    %c0_i32_0 = arith.constant 0 : i32
    %c0_i32_1 = arith.constant 0 : i32
    return %c0_i32, %c0_i32_0 : i32, i32
  }
  func.func @transform_2(%arg0: i32) -> (i32, i32) {
    %c0_i32 = arith.constant 0 : i32
    %c0_i32_0 = arith.constant 0 : i32
    %c0_i32_1 = arith.constant 0 : i32
    return %c0_i32, %c0_i32_0 : i32, i32
  }
  func.func @transform_3(%arg0: i32) -> (i32, i32) {
    %c0_i32 = arith.constant 0 : i32
    %c0_i32_0 = arith.constant 0 : i32
    %c0_i32_1 = arith.constant 0 : i32
    return %c0_i32, %c0_i32_0 : i32, i32
  }
  func.func @transform_4(%arg0: i32) -> (i32, i32) {
    %c0_i32 = arith.constant 0 : i32
    %c0_i32_0 = arith.constant 0 : i32
    %c0_i32_1 = arith.constant 0 : i32
    return %c0_i32, %c0_i32_0 : i32, i32
  }
  func.func @transform_5(%arg0: i32) -> (i32, i32) {
    %c0_i32 = arith.constant 0 : i32
    %c0_i32_0 = arith.constant 0 : i32
    return %arg0, %c0_i32 : i32, i32
  }
  func.func @transform_6(%arg0: i32) -> (i32, i32) {
    %c0_i32 = arith.constant 0 : i32
    %c0_i32_0 = arith.constant 0 : i32
    return %arg0, %c0_i32 : i32, i32
  }
  func.func @transform_7(%arg0: i32) -> (i32, i32) {
    %c0_i32 = arith.constant 0 : i32
    %c0_i32_0 = arith.constant 0 : i32
    return %arg0, %c0_i32 : i32, i32
  }
}

</mosaic_0001>

<llo_original>
// kernel: tpu_custom_call.1
$region0: #{tpu_custom_call.1}
  #allocation0 [shape = 'u32[]', space=smem, size = 0x4, offset = 0x4, fixed_abs, tag = 'smem constant byte address 0x4 - core index']
  #allocation1 [shape = 'u32[144,128]{1,0:T(1,128)}', space=vmem, size = 0x12000, scoped, tag = 'internal scratch']
  %s0 = inlined_call_operand.hbm [shape: f32[128,128], index: 0, kind: input, shape index: {}]
  %s1 = inlined_call_operand.vmem [shape: f32[1,128], index: 1, kind: input, shape index: {}]
  %s2 = inlined_call_operand.vmem [shape: f32[1,128], index: 2, kind: input, shape index: {}]
  %s3 = inlined_call_operand.hbm [shape: bf16[128,384], index: 3, kind: input, shape index: {}]
  %s4 = inlined_call_operand.vmem [shape: f32[1,384], index: 4, kind: input, shape index: {}]
  %s5 = inlined_call_operand.hbm [shape: bf16[128,128], index: 5, kind: output, shape index: {0}]
  %s6 = inlined_call_operand.hbm [shape: bf16[128,128], index: 6, kind: output, shape index: {1}]
  %s7 = inlined_call_operand.hbm [shape: bf16[128,128], index: 7, kind: output, shape index: {2}]
  %8 = xla_tuple %s5, %s6, %s7
  %s9 = sld [smem:[#allocation0]]
  $region54: #{tpu_custom_call.1} parent=0
    _
  %s11 = ssub.s32 1, %s9
  %s12 = scalar_select 0, %s11, %s9
  $region1: #{tpu_custom_call.1} parent=0
    #allocation2 [shape = 'u8[65536]{0}', space=vmem, size = 0x10000, scoped, tag = 'input window, operand 0, single buffered']
    #allocation3 [shape = 's32[1]{0}', space=sflag, size = 0x4, scoped, tag = 'scoped memory for tpu_custom_call.1']
    #allocation4 [shape = 's32[1]{0}', space=sflag, size = 0x4, scoped, tag = 'scoped memory for tpu_custom_call.1']
    #allocation5 [shape = 'u8[98304]{0}', space=vmem, size = 0x18000, scoped, tag = 'input window, operand 3, single buffered']
    #allocation6 [shape = 's32[1]{0}', space=sflag, size = 0x4, scoped, tag = 'scoped memory for tpu_custom_call.1']
    #allocation7 [shape = 'u8[32768]{0}', space=vmem, size = 0x8000, scoped, tag = 'output window, operand 0, single buffered']
    #allocation8 [shape = 'u8[32768]{0}', space=vmem, size = 0x8000, scoped, tag = 'output window, operand 1, single buffered']
    #allocation9 [shape = 's32[1]{0}', space=sflag, size = 0x4, scoped, tag = 'scoped memory for tpu_custom_call.1']
    #allocation10 [shape = 'u8[32768]{0}', space=vmem, size = 0x8000, scoped, tag = 'output window, operand 2, single buffered']
    %13 = vsyncpa [#allocation3], 0
    %14 = vsyncpa [#allocation6], 0
    %15 = vsyncpa [#allocation4], 0
    %16 = vsyncpa [#allocation9], 0
    // Predicated region
    $region2: #{tpu_custom_call.1} parent=1 // pred_check
      _
    $region3: #{tpu_custom_call.1} parent=1 // pred_check_branch
      %18 = sbr.rel (0) target = $region5
    $region4: #{tpu_custom_call.1} parent=1 // pred_region
      %s20 = ssub.s32 2048, 2048
      %21 = vsyncadd [#allocation3], %s20
      %s22 = sshll.u32 [#allocation2], 4
      %s23 = int_to_ptr.vmem [resolvable:$true] %s22
      %28 = dma.hbm_to_vmem [thread:$0]  %s0, 2048, %s23, [#allocation3], 128, 128, 8
    $region5: #{tpu_custom_call.1} parent=1 // pred_fallthru
      _
    // Predicated region
    $region6: #{tpu_custom_call.1} parent=1 // pred_check
      _
    $region7: #{tpu_custom_call.1} parent=1 // pred_check_branch
      %30 = sbr.rel (0) target = $region9
    $region8: #{tpu_custom_call.1} parent=1 // pred_region
      _
    $region9: #{tpu_custom_call.1} parent=1 // pred_fallthru
      _
    // Predicated region
    $region10: #{tpu_custom_call.1} parent=1 // pred_check
      _
    $region11: #{tpu_custom_call.1} parent=1 // pred_check_branch
      %32 = sbr.rel (0) target = $region13
    $region12: #{tpu_custom_call.1} parent=1 // pred_region
      _
    $region13: #{tpu_custom_call.1} parent=1 // pred_fallthru
      _
    // Predicated region
    $region14: #{tpu_custom_call.1} parent=1 // pred_check
      _
    $region15: #{tpu_custom_call.1} parent=1 // pred_check_branch
      %34 = sbr.rel (0) target = $region17
    $region16: #{tpu_custom_call.1} parent=1 // pred_region
      %s36 = ssub.s32 3072, 3072
      %37 = vsyncadd [#allocation6], %s36
      %s38 = sshll.u32 [#allocation5], 4
      %s39 = int_to_ptr.vmem [resolvable:$true] %s38
      %44 = dma.hbm_to_vmem [thread:$0]  %s3, 3072, %s39, [#allocation6], 192, 192, 12
    $region17: #{tpu_custom_call.1} parent=1 // pred_fallthru
      _
    // Predicated region
    $region18: #{tpu_custom_call.1} parent=1 // pred_check
      _
    $region19: #{tpu_custom_call.1} parent=1 // pred_check_branch
      %46 = sbr.rel (0) target = $region21
    $region20: #{tpu_custom_call.1} parent=1 // pred_region
      _
    $region21: #{tpu_custom_call.1} parent=1 // pred_fallthru
      _
    // Predicated region
    $region22: #{tpu_custom_call.1} parent=1 // pred_check
      _
    $region23: #{tpu_custom_call.1} parent=1 // pred_check_branch
      %48 = sbr.rel (0) target = $region25
    $region24: #{tpu_custom_call.1} parent=1 // pred_region
      %49 = dma.done [#allocation3], 2048
    $region25: #{tpu_custom_call.1} parent=1 // pred_fallthru
      _
    // Predicated region
    $region26: #{tpu_custom_call.1} parent=1 // pred_check
      _
    $region27: #{tpu_custom_call.1} parent=1 // pred_check_branch
      %51 = sbr.rel (0) target = $region29
    $region28: #{tpu_custom_call.1} parent=1 // pred_region
      %52 = dma.done [#allocation6], 3072
    $region29: #{tpu_custom_call.1} parent=1 // pred_fallthru
      _
    %v54 = vld [vmem:[#allocation2] sm:$0xff]
    %v55 = vld [vmem:[#allocation2 + $0x8] sm:$0xff]
    %v56 = vld [vmem:[#allocation2 + $0x10] sm:$0xff]
    %v57 = vld [vmem:[#allocation2 + $0x18] sm:$0xff]
    %v58 = vld [vmem:[#allocation2 + $0x20] sm:$0xff]
    %v59 = vld [vmem:[#allocation2 + $0x28] sm:$0xff]
    %v60 = vld [vmem:[#allocation2 + $0x30] sm:$0xff]
    %v61 = vld [vmem:[#allocation2 + $0x38] sm:$0xff]
    %v62 = vld [vmem:[#allocation2 + $0x40] sm:$0xff]
    %v63 = vld [vmem:[#allocation2 + $0x48] sm:$0xff]
    %v64 = vld [vmem:[#allocation2 + $0x50] sm:$0xff]
    %v65 = vld [vmem:[#allocation2 + $0x58] sm:$0xff]
    %v66 = vld [vmem:[#allocation2 + $0x60] sm:$0xff]
    %v67 = vld [vmem:[#allocation2 + $0x68] sm:$0xff]
    %v68 = vld [vmem:[#allocation2 + $0x70] sm:$0xff]
    %v69 = vld [vmem:[#allocation2 + $0x78] sm:$0xff]
    %v70 = vld [vmem:[%s1] sm:$0x1]
    %v71 = vld [vmem:[%s2] sm:$0x1]
    %72 = vadd.xlane.f32.xlu0 %v54
    %v73 = vpop.xlane.xlu0 %72
    %74 = vadd.xlane.f32.xlu0 %v55
    %v75 = vpop.xlane.xlu0 %74
    %76 = vadd.xlane.f32.xlu0 %v56
    %v77 = vpop.xlane.xlu0 %76
    %78 = vadd.xlane.f32.xlu0 %v57
    %v79 = vpop.xlane.xlu0 %78
    %80 = vadd.xlane.f32.xlu0 %v58
    %v81 = vpop.xlane.xlu0 %80
    %82 = vadd.xlane.f32.xlu0 %v59
    %v83 = vpop.xlane.xlu0 %82
    %84 = vadd.xlane.f32.xlu0 %v60
    %v85 = vpop.xlane.xlu0 %84
    %86 = vadd.xlane.f32.xlu0 %v61
    %v87 = vpop.xlane.xlu0 %86
    %88 = vadd.xlane.f32.xlu0 %v62
    %v89 = vpop.xlane.xlu0 %88
    %90 = vadd.xlane.f32.xlu0 %v63
    %v91 = vpop.xlane.xlu0 %90
    %92 = vadd.xlane.f32.xlu0 %v64
    %v93 = vpop.xlane.xlu0 %92
    %94 = vadd.xlane.f32.xlu0 %v65
    %v95 = vpop.xlane.xlu0 %94
    %96 = vadd.xlane.f32.xlu0 %v66
    %v97 = vpop.xlane.xlu0 %96
    %98 = vadd.xlane.f32.xlu0 %v67
    %v99 = vpop.xlane.xlu0 %98
    %100 = vadd.xlane.f32.xlu0 %v68
    %v101 = vpop.xlane.xlu0 %100
    %102 = vadd.xlane.f32.xlu0 %v69
    %v103 = vpop.xlane.xlu0 %102
    %v104 = vrcp.pop 128.0
    %v105 = vmul.f32 %v73, %v104
    %v106 = vmul.f32 %v75, %v104
    %v107 = vmul.f32 %v77, %v104
    %v108 = vmul.f32 %v79, %v104
    %v109 = vmul.f32 %v81, %v104
    %v110 = vmul.f32 %v83, %v104
    %v111 = vmul.f32 %v85, %v104
    %v112 = vmul.f32 %v87, %v104
    %v113 = vmul.f32 %v89, %v104
    %v114 = vmul.f32 %v91, %v104
    %v115 = vmul.f32 %v93, %v104
    %v116 = vmul.f32 %v95, %v104
    %v117 = vmul.f32 %v97, %v104
    %v118 = vmul.f32 %v99, %v104
    %v119 = vmul.f32 %v101, %v104
    %v120 = vmul.f32 %v103, %v104
    %v121 = vmul.f32 %v54, %v54
    %v122 = vmul.f32 %v55, %v55
    %v123 = vmul.f32 %v56, %v56
    %v124 = vmul.f32 %v57, %v57
    %v125 = vmul.f32 %v58, %v58
    %v126 = vmul.f32 %v59, %v59
    %v127 = vmul.f32 %v60, %v60
    %v128 = vmul.f32 %v61, %v61
    %v129 = vmul.f32 %v62, %v62
    %v130 = vmul.f32 %v63, %v63
    %v131 = vmul.f32 %v64, %v64
    %v132 = vmul.f32 %v65, %v65
    %v133 = vmul.f32 %v66, %v66
    %v134 = vmul.f32 %v67, %v67
    %v135 = vmul.f32 %v68, %v68
    %v136 = vmul.f32 %v69, %v69
    %137 = vadd.xlane.f32.xlu0 %v121
    %v138 = vpop.xlane.xlu0 %137
    %139 = vadd.xlane.f32.xlu0 %v122
    %v140 = vpop.xlane.xlu0 %139
    %141 = vadd.xlane.f32.xlu0 %v123
    %v142 = vpop.xlane.xlu0 %141
    %143 = vadd.xlane.f32.xlu0 %v124
    %v144 = vpop.xlane.xlu0 %143
    %145 = vadd.xlane.f32.xlu0 %v125
    %v146 = vpop.xlane.xlu0 %145
    %147 = vadd.xlane.f32.xlu0 %v126
    %v148 = vpop.xlane.xlu0 %147
    %149 = vadd.xlane.f32.xlu0 %v127
    %v150 = vpop.xlane.xlu0 %149
    %151 = vadd.xlane.f32.xlu0 %v128
    %v152 = vpop.xlane.xlu0 %151
    %153 = vadd.xlane.f32.xlu0 %v129
    %v154 = vpop.xlane.xlu0 %153
    %155 = vadd.xlane.f32.xlu0 %v130
    %v156 = vpop.xlane.xlu0 %155
    %157 = vadd.xlane.f32.xlu0 %v131
    %v158 = vpop.xlane.xlu0 %157
    %159 = vadd.xlane.f32.xlu0 %v132
    %v160 = vpop.xlane.xlu0 %159
    %161 = vadd.xlane.f32.xlu0 %v133
    %v162 = vpop.xlane.xlu0 %161
    %163 = vadd.xlane.f32.xlu0 %v134
    %v164 = vpop.xlane.xlu0 %163
    %165 = vadd.xlane.f32.xlu0 %v135
    %v166 = vpop.xlane.xlu0 %165
    %167 = vadd.xlane.f32.xlu0 %v136
    %v168 = vpop.xlane.xlu0 %167
    %v169 = vmul.f32 %v138, %v104
    %v170 = vmul.f32 %v140, %v104
    %v171 = vmul.f32 %v142, %v104
    %v172 = vmul.f32 %v144, %v104
    %v173 = vmul.f32 %v146, %v104
    %v174 = vmul.f32 %v148, %v104
    %v175 = vmul.f32 %v150, %v104
    %v176 = vmul.f32 %v152, %v104
    %v177 = vmul.f32 %v154, %v104
    %v178 = vmul.f32 %v156, %v104
    %v179 = vmul.f32 %v158, %v104
    %v180 = vmul.f32 %v160, %v104
    %v181 = vmul.f32 %v162, %v104
    %v182 = vmul.f32 %v164, %v104
    %v183 = vmul.f32 %v166, %v104
    %v184 = vmul.f32 %v168, %v104
    %v185 = vmul.f32 %v105, %v105
    %v186 = vmul.f32 %v106, %v106
    %v187 = vmul.f32 %v107, %v107
    %v188 = vmul.f32 %v108, %v108
    %v189 = vmul.f32 %v109, %v109
    %v190 = vmul.f32 %v110, %v110
    %v191 = vmul.f32 %v111, %v111
    %v192 = vmul.f32 %v112, %v112
    %v193 = vmul.f32 %v113, %v113
    %v194 = vmul.f32 %v114, %v114
    %v195 = vmul.f32 %v115, %v115
    %v196 = vmul.f32 %v116, %v116
    %v197 = vmul.f32 %v117, %v117
    %v198 = vmul.f32 %v118, %v118
    %v199 = vmul.f32 %v119, %v119
    %v200 = vmul.f32 %v120, %v120
    %v201 = vsub.f32 %v169, %v185
    %v202 = vsub.f32 %v170, %v186
    %v203 = vsub.f32 %v171, %v187
    %v204 = vsub.f32 %v172, %v188
    %v205 = vsub.f32 %v173, %v189
    %v206 = vsub.f32 %v174, %v190
    %v207 = vsub.f32 %v175, %v191
    %v208 = vsub.f32 %v176, %v192
    %v209 = vsub.f32 %v177, %v193
    %v210 = vsub.f32 %v178, %v194
    %v211 = vsub.f32 %v179, %v195
    %v212 = vsub.f32 %v180, %v196
    %v213 = vsub.f32 %v181, %v197
    %v214 = vsub.f32 %v182, %v198
    %v215 = vsub.f32 %v183, %v199
    %v216 = vsub.f32 %v184, %v200
    %v217 = vmax.f32 %v201, 0.0
    %v218 = vmax.f32 %v202, 0.0
    %v219 = vmax.f32 %v203, 0.0
    %v220 = vmax.f32 %v204, 0.0
    %v221 = vmax.f32 %v205, 0.0
    %v222 = vmax.f32 %v206, 0.0
    %v223 = vmax.f32 %v207, 0.0
    %v224 = vmax.f32 %v208, 0.0
    %v225 = vmax.f32 %v209, 0.0
    %v226 = vmax.f32 %v210, 0.0
    %v227 = vmax.f32 %v211, 0.0
    %v228 = vmax.f32 %v212, 0.0
    %v229 = vmax.f32 %v213, 0.0
    %v230 = vmax.f32 %v214, 0.0
    %v231 = vmax.f32 %v215, 0.0
    %v232 = vmax.f32 %v216, 0.0
    %v233 = vsub.f32 %v54, %v105
    %v234 = vsub.f32 %v55, %v106
    %v235 = vsub.f32 %v56, %v107
    %v236 = vsub.f32 %v57, %v108
    %v237 = vsub.f32 %v58, %v109
    %v238 = vsub.f32 %v59, %v110
    %v239 = vsub.f32 %v60, %v111
    %v240 = vsub.f32 %v61, %v112
    %v241 = vsub.f32 %v62, %v113
    %v242 = vsub.f32 %v63, %v114
    %v243 = vsub.f32 %v64, %v115
    %v244 = vsub.f32 %v65, %v116
    %v245 = vsub.f32 %v66, %v117
    %v246 = vsub.f32 %v67, %v118
    %v247 = vsub.f32 %v68, %v119
    %v248 = vsub.f32 %v69, %v120
    %v249 = vadd.f32 %v217, 1e-05
    %v250 = vadd.f32 %v218, 1e-05
    %v251 = vadd.f32 %v219, 1e-05
    %v252 = vadd.f32 %v220, 1e-05
    %v253 = vadd.f32 %v221, 1e-05
    %v254 = vadd.f32 %v222, 1e-05
    %v255 = vadd.f32 %v223, 1e-05
    %v256 = vadd.f32 %v224, 1e-05
    %v257 = vadd.f32 %v225, 1e-05
    %v258 = vadd.f32 %v226, 1e-05
    %v259 = vadd.f32 %v227, 1e-05
    %v260 = vadd.f32 %v228, 1e-05
    %v261 = vadd.f32 %v229, 1e-05
    %v262 = vadd.f32 %v230, 1e-05
    %v263 = vadd.f32 %v231, 1e-05
    %v264 = vadd.f32 %v232, 1e-05
    %v265 = vrsqrt.pop %v249
    %v266 = vrsqrt.pop %v250
    %v267 = vrsqrt.pop %v251
    %v268 = vrsqrt.pop %v252
    %v269 = vrsqrt.pop %v253
    %v270 = vrsqrt.pop %v254
    %v271 = vrsqrt.pop %v255
    %v272 = vrsqrt.pop %v256
    %v273 = vrsqrt.pop %v257
    %v274 = vrsqrt.pop %v258
    %v275 = vrsqrt.pop %v259
    %v276 = vrsqrt.pop %v260
    %v277 = vrsqrt.pop %v261
    %v278 = vrsqrt.pop %v262
    %v279 = vrsqrt.pop %v263
    %v280 = vrsqrt.pop %v264
    %v281 = vmul.f32 %v233, %v265
    %v282 = vmul.f32 %v234, %v266
    %v283 = vmul.f32 %v235, %v267
    %v284 = vmul.f32 %v236, %v268
    %v285 = vmul.f32 %v237, %v269
    %v286 = vmul.f32 %v238, %v270
    %v287 = vmul.f32 %v239, %v271
    %v288 = vmul.f32 %v240, %v272
    %v289 = vmul.f32 %v241, %v273
    %v290 = vmul.f32 %v242, %v274
    %v291 = vmul.f32 %v243, %v275
    %v292 = vmul.f32 %v244, %v276
    %v293 = vmul.f32 %v245, %v277
    %v294 = vmul.f32 %v246, %v278
    %v295 = vmul.f32 %v247, %v279
    %v296 = vmul.f32 %v248, %v280
    %v298 = vlaneseq
    %v299 = vshrl.u32 %v298, 7
    %v300 = vsub.s32 0, %v299
    %v301 = vrot.slane %v70, %v300
    %v303 = vmul.f32 %v281, %v301
    %v304 = vmul.f32 %v282, %v301
    %v305 = vmul.f32 %v283, %v301
    %v306 = vmul.f32 %v284, %v301
    %v307 = vmul.f32 %v285, %v301
    %v308 = vmul.f32 %v286, %v301
    %v309 = vmul.f32 %v287, %v301
    %v310 = vmul.f32 %v288, %v301
    %v311 = vmul.f32 %v289, %v301
    %v312 = vmul.f32 %v290, %v301
    %v313 = vmul.f32 %v291, %v301
    %v314 = vmul.f32 %v292, %v301
    %v315 = vmul.f32 %v293, %v301
    %v316 = vmul.f32 %v294, %v301
    %v317 = vmul.f32 %v295, %v301
    %v318 = vmul.f32 %v296, %v301
    %v320 = vlaneseq
    %v321 = vshrl.u32 %v320, 7
    %v322 = vsub.s32 0, %v321
    %v323 = vrot.slane %v71, %v322
    %v325 = vadd.f32 %v303, %v323
    %v326 = vadd.f32 %v304, %v323
    %v327 = vadd.f32 %v305, %v323
    %v328 = vadd.f32 %v306, %v323
    %v329 = vadd.f32 %v307, %v323
    %v330 = vadd.f32 %v308, %v323
    %v331 = vadd.f32 %v309, %v323
    %v332 = vadd.f32 %v310, %v323
    %v333 = vadd.f32 %v311, %v323
    %v334 = vadd.f32 %v312, %v323
    %v335 = vadd.f32 %v313, %v323
    %v336 = vadd.f32 %v314, %v323
    %v337 = vadd.f32 %v315, %v323
    %v338 = vadd.f32 %v316, %v323
    %v339 = vadd.f32 %v317, %v323
    %v340 = vadd.f32 %v318, %v323
    %v341 = vpack.c.bf16 %v326, %v325
    %v342 = vpack.c.bf16 %v328, %v327
    %v343 = vpack.c.bf16 %v330, %v329
    %v344 = vpack.c.bf16 %v332, %v331
    %v345 = vpack.c.bf16 %v334, %v333
    %v346 = vpack.c.bf16 %v336, %v335
    %v347 = vpack.c.bf16 %v338, %v337
    %v348 = vpack.c.bf16 %v340, %v339
    %v349 = vld [vmem:[#allocation5] sm:$0xff]
    %v350 = vld [vmem:[#allocation5 + $0x8] sm:$0xf]
    %v351 = vld [vmem:[#allocation5 + $0xc] sm:$0xff]
    %v352 = vld [vmem:[#allocation5 + $0x14] sm:$0xf]
    %v353 = vld [vmem:[#allocation5 + $0x18] sm:$0xff]
    %v354 = vld [vmem:[#allocation5 + $0x20] sm:$0xf]
    %v355 = vld [vmem:[#allocation5 + $0x24] sm:$0xff]
    %v356 = vld [vmem:[#allocation5 + $0x2c] sm:$0xf]
    %v357 = vld [vmem:[#allocation5 + $0x30] sm:$0xff]
    %v358 = vld [vmem:[#allocation5 + $0x38] sm:$0xf]
    %v359 = vld [vmem:[#allocation5 + $0x3c] sm:$0xff]
    %v360 = vld [vmem:[#allocation5 + $0x44] sm:$0xf]
    %v361 = vld [vmem:[#allocation5 + $0x48] sm:$0xff]
    %v362 = vld [vmem:[#allocation5 + $0x50] sm:$0xf]
    %v363 = vld [vmem:[#allocation5 + $0x54] sm:$0xff]
    %v364 = vld [vmem:[#allocation5 + $0x5c] sm:$0xf]
    %v365 = vld [vmem:[#allocation5 + $0x60] sm:$0xff]
    %v366 = vld [vmem:[#allocation5 + $0x68] sm:$0xf]
    %v367 = vld [vmem:[#allocation5 + $0x6c] sm:$0xff]
    %v368 = vld [vmem:[#allocation5 + $0x74] sm:$0xf]
    %v369 = vld [vmem:[#allocation5 + $0x78] sm:$0xff]
    %v370 = vld [vmem:[#allocation5 + $0x80] sm:$0xf]
    %v371 = vld [vmem:[#allocation5 + $0x84] sm:$0xff]
    %v372 = vld [vmem:[#allocation5 + $0x8c] sm:$0xf]
    %v373 = vld [vmem:[#allocation5 + $0x90] sm:$0xff]
    %v374 = vld [vmem:[#allocation5 + $0x98] sm:$0xf]
    %v375 = vld [vmem:[#allocation5 + $0x9c] sm:$0xff]
    %v376 = vld [vmem:[#allocation5 + $0xa4] sm:$0xf]
    %v377 = vld [vmem:[#allocation5 + $0xa8] sm:$0xff]
    %v378 = vld [vmem:[#allocation5 + $0xb0] sm:$0xf]
    %v379 = vld [vmem:[#allocation5 + $0xb4] sm:$0xff]
    %v380 = vld [vmem:[#allocation5 + $0xbc] sm:$0xf]
    %v381 = vld [vmem:[%s4] sm:$0x7]
    %v383 = vlaneseq
    %v384 = vshrl.u32 %v383, 7
    %v385 = vsub.s32 0, %v384
    %v386 = vrot.slane %v381, %v385
    %v387 = vlaneseq
    %v388 = vshrl.u32 %v387, 7
    %v389 = vsub.s32 1, %v388
    %v390 = vrot.slane %v381, %v389
    %v391 = vlaneseq
    %v392 = vshrl.u32 %v391, 7
    %v393 = vsub.s32 2, %v392
    %v394 = vrot.slane %v381, %v393
    %v430 = vunpack.c.l.b16 %v349
    %v431 = vunpack.c.h.b16 %v349
    %v432 = vunpack.c.l.b16 %v350
    %v433 = vunpack.c.l.b16 %v351
    %v434 = vunpack.c.h.b16 %v351
    %v435 = vunpack.c.l.b16 %v352
    %v436 = vunpack.c.l.b16 %v353
    %v437 = vunpack.c.h.b16 %v353
    %v438 = vunpack.c.l.b16 %v354
    %v439 = vunpack.c.l.b16 %v355
    %v440 = vunpack.c.h.b16 %v355
    %v441 = vunpack.c.l.b16 %v356
    %v442 = vunpack.c.l.b16 %v357
    %v443 = vunpack.c.h.b16 %v357
    %v444 = vunpack.c.l.b16 %v358
    %v445 = vunpack.c.l.b16 %v359
    %v446 = vunpack.c.h.b16 %v359
    %v447 = vunpack.c.l.b16 %v360
    %v448 = vunpack.c.l.b16 %v361
    %v449 = vunpack.c.h.b16 %v361
    %v450 = vunpack.c.l.b16 %v362
    %v451 = vunpack.c.l.b16 %v363
    %v452 = vunpack.c.h.b16 %v363
    %v453 = vunpack.c.l.b16 %v364
    %v454 = vunpack.c.l.b16 %v365
    %v455 = vunpack.c.h.b16 %v365
    %v456 = vunpack.c.l.b16 %v366
    %v457 = vunpack.c.l.b16 %v367
    %v458 = vunpack.c.h.b16 %v367
    %v459 = vunpack.c.l.b16 %v368
    %v460 = vunpack.c.l.b16 %v369
    %v461 = vunpack.c.h.b16 %v369
    %v462 = vunpack.c.l.b16 %v370
    %v463 = vunpack.c.l.b16 %v371
    %v464 = vunpack.c.h.b16 %v371
    %v465 = vunpack.c.l.b16 %v372
    %v466 = vunpack.c.l.b16 %v373
    %v467 = vunpack.c.h.b16 %v373
    %v468 = vunpack.c.l.b16 %v374
    %v469 = vunpack.c.l.b16 %v375
    %v470 = vunpack.c.h.b16 %v375
    %v471 = vunpack.c.l.b16 %v376
    %v472 = vunpack.c.l.b16 %v377
    %v473 = vunpack.c.h.b16 %v377
    %v474 = vunpack.c.l.b16 %v378
    %v475 = vunpack.c.l.b16 %v379
    %v476 = vunpack.c.h.b16 %v379
    %v477 = vunpack.c.l.b16 %v380
    %v478 = vpack.c.b16 %v433, %v430
    %v479 = vpack.c.b16 %v434, %v431
    %v480 = vpack.c.b16 %v435, %v432
    %v481 = vpack.c.b16 %v439, %v436
    %v482 = vpack.c.b16 %v440, %v437
    %v483 = vpack.c.b16 %v441, %v438
    %v484 = vpack.c.b16 %v445, %v442
    %v485 = vpack.c.b16 %v446, %v443
    %v486 = vpack.c.b16 %v447, %v444
    %v487 = vpack.c.b16 %v451, %v448
    %v488 = vpack.c.b16 %v452, %v449
    %v489 = vpack.c.b16 %v453, %v450
    %v490 = vpack.c.b16 %v457, %v454
    %v491 = vpack.c.b16 %v458, %v455
    %v492 = vpack.c.b16 %v459, %v456
    %v493 = vpack.c.b16 %v463, %v460
    %v494 = vpack.c.b16 %v464, %v461
    %v495 = vpack.c.b16 %v465, %v462
    %v496 = vpack.c.b16 %v469, %v466
    %v497 = vpack.c.b16 %v470, %v467
    %v498 = vpack.c.b16 %v471, %v468
    %v499 = vpack.c.b16 %v475, %v472
    %v500 = vpack.c.b16 %v476, %v473
    %v501 = vpack.c.b16 %v477, %v474
    %526 = vmatprep.subr.bf16.mxu0 %v479
    %527 = vmatpush1.bf16.msra.mxu0 %v478
    %528 = vmatprep.subr.bf16.mxu0 %v482
    %529 = vmatpush1.bf16.msra.mxu0 %v481
    %530 = vmatprep.subr.bf16.mxu0 %v485
    %531 = vmatpush1.bf16.msra.mxu0 %v484
    %532 = vmatprep.subr.bf16.mxu0 %v488
    %533 = vmatpush1.bf16.msra.mxu0 %v487
    %534 = vmatprep.subr.bf16.mxu0 %v491
    %535 = vmatpush1.bf16.msra.mxu0 %v490
    %536 = vmatprep.subr.bf16.mxu0 %v494
    %537 = vmatpush1.bf16.msra.mxu0 %v493
    %538 = vmatprep.subr.bf16.mxu0 %v497
    %539 = vmatpush1.bf16.msra.mxu0 %v496
    %540 = vmatprep.subr.bf16.mxu0 %v500
    %541 = vmatpush1.bf16.msra.mxu0 %v499
    %542 = vmatprep.subr.bf16.mxu0 0
    %543 = vmatpush1.bf16.msra.mxu0 0
    %544 = vmatprep.subr.bf16.mxu0 0
    %545 = vmatpush1.bf16.msra.mxu0 0
    %546 = vmatprep.subr.bf16.mxu0 0
    %547 = vmatpush1.bf16.msra.mxu0 0
    %548 = vmatprep.subr.bf16.mxu0 0
    %549 = vmatpush1.bf16.msra.mxu0 0
    %550 = vmatprep.subr.bf16.mxu0 0
    %551 = vmatpush1.bf16.msra.mxu0 0
    %552 = vmatprep.subr.bf16.mxu0 0
    %553 = vmatpush1.bf16.msra.mxu0 0
    %554 = vmatprep.subr.bf16.mxu0 0
    %555 = vmatpush1.bf16.msra.mxu0 0
    %556 = vmatprep.subr.bf16.mxu0 0
    %557 = vmatpush1.bf16.msra.mxu0 0
    %558 = vmatprep.mubr.bf16.mxu0 0
    %559 = vmatmul.mubr.bf16.gmra.mrb[0].mxu0 %v341
    %v560 = vpop.f32.mrb[0].mxu0
    %v561 = vadd.f32 %v386, %v560
    %v562 = vpop.f32.mrb[0].mxu0
    %v563 = vadd.f32 %v390, %v562
    %v564 = vpop.f32.mrb[0].mxu0
    %v565 = vadd.f32 %v386, %v564
    %v566 = vpop.f32.mrb[0].mxu0
    %v567 = vadd.f32 %v390, %v566
    %568 = vmatprep.mubr.bf16.mxu0 0
    %569 = vmatmul.mubr.bf16.gmra.mrb[0].mxu0 %v342
    %v570 = vpop.f32.mrb[0].mxu0
    %v571 = vadd.f32 %v386, %v570
    %v572 = vpop.f32.mrb[0].mxu0
    %v573 = vadd.f32 %v390, %v572
    %v574 = vpop.f32.mrb[0].mxu0
    %v575 = vadd.f32 %v386, %v574
    %v576 = vpop.f32.mrb[0].mxu0
    %v577 = vadd.f32 %v390, %v576
    %578 = vmatprep.mubr.bf16.mxu0 0
    %579 = vmatmul.mubr.bf16.gmra.mrb[0].mxu0 %v343
    %v580 = vpop.f32.mrb[0].mxu0
    %v581 = vadd.f32 %v386, %v580
    %v582 = vpop.f32.mrb[0].mxu0
    %v583 = vadd.f32 %v390, %v582
    %v584 = vpop.f32.mrb[0].mxu0
    %v585 = vadd.f32 %v386, %v584
    %v586 = vpop.f32.mrb[0].mxu0
    %v587 = vadd.f32 %v390, %v586
    %588 = vmatprep.mubr.bf16.mxu0 0
    %589 = vmatmul.mubr.bf16.gmra.mrb[0].mxu0 %v344
    %v590 = vpop.f32.mrb[0].mxu0
    %v591 = vadd.f32 %v386, %v590
    %v592 = vpop.f32.mrb[0].mxu0
    %v593 = vadd.f32 %v390, %v592
    %v594 = vpop.f32.mrb[0].mxu0
    %v595 = vadd.f32 %v386, %v594
    %v596 = vpop.f32.mrb[0].mxu0
    %v597 = vadd.f32 %v390, %v596
    %598 = vmatprep.mubr.bf16.mxu0 0
    %599 = vmatmul.mubr.bf16.gmra.mrb[0].mxu0 %v345
    %v600 = vpop.f32.mrb[0].mxu0
    %v601 = vadd.f32 %v386, %v600
    %v602 = vpop.f32.mrb[0].mxu0
    %v603 = vadd.f32 %v390, %v602
    %v604 = vpop.f32.mrb[0].mxu0
    %v605 = vadd.f32 %v386, %v604
    %v606 = vpop.f32.mrb[0].mxu0
    %v607 = vadd.f32 %v390, %v606
    %608 = vmatprep.mubr.bf16.mxu0 0
    %609 = vmatmul.mubr.bf16.gmra.mrb[0].mxu0 %v346
    %v610 = vpop.f32.mrb[0].mxu0
    %v611 = vadd.f32 %v386, %v610
    %v612 = vpop.f32.mrb[0].mxu0
    %v613 = vadd.f32 %v390, %v612
    %v614 = vpop.f32.mrb[0].mxu0
    %v615 = vadd.f32 %v386, %v614
    %v616 = vpop.f32.mrb[0].mxu0
    %v617 = vadd.f32 %v390, %v616
    %618 = vmatprep.mubr.bf16.mxu0 0
    %619 = vmatmul.mubr.bf16.gmra.mrb[0].mxu0 %v347
    %v620 = vpop.f32.mrb[0].mxu0
    %v621 = vadd.f32 %v386, %v620
    %v622 = vpop.f32.mrb[0].mxu0
    %v623 = vadd.f32 %v390, %v622
    %v624 = vpop.f32.mrb[0].mxu0
    %v625 = vadd.f32 %v386, %v624
    %v626 = vpop.f32.mrb[0].mxu0
    %v627 = vadd.f32 %v390, %v626
    %628 = vmatprep.mubr.bf16.mxu0 0
    %629 = vmatmul.mubr.bf16.gmra.mrb[0].mxu0 %v348
    %v630 = vpop.f32.mrb[0].mxu0
    %v631 = vadd.f32 %v386, %v630
    %v632 = vpop.f32.mrb[0].mxu0
    %v633 = vadd.f32 %v390, %v632
    %v634 = vpop.f32.mrb[0].mxu0
    %v635 = vadd.f32 %v386, %v634
    %v636 = vpop.f32.mrb[0].mxu0
    %v637 = vadd.f32 %v390, %v636
    %638 = vdwg.mxu0
    %639 = vmatprep.subr.bf16.mxu0 0
    %640 = vmatpush1.bf16.msra.mxu0 %v480
    %641 = vmatprep.subr.bf16.mxu0 0
    %642 = vmatpush1.bf16.msra.mxu0 %v483
    %643 = vmatprep.subr.bf16.mxu0 0
    %644 = vmatpush1.bf16.msra.mxu0 %v486
    %645 = vmatprep.subr.bf16.mxu0 0
    %646 = vmatpush1.bf16.msra.mxu0 %v489
    %647 = vmatprep.subr.bf16.mxu0 0
    %648 = vmatpush1.bf16.msra.mxu0 %v492
    %649 = vmatprep.subr.bf16.mxu0 0
    %650 = vmatpush1.bf16.msra.mxu0 %v495
    %651 = vmatprep.subr.bf16.mxu0 0
    %652 = vmatpush1.bf16.msra.mxu0 %v498
    %653 = vmatprep.subr.bf16.mxu0 0
    %654 = vmatpush1.bf16.msra.mxu0 %v501
    %655 = vmatprep.subr.bf16.mxu0 0
    %656 = vmatpush1.bf16.msra.mxu0 0
    %657 = vmatprep.subr.bf16.mxu0 0
    %658 = vmatpush1.bf16.msra.mxu0 0
    %659 = vmatprep.subr.bf16.mxu0 0
    %660 = vmatpush1.bf16.msra.mxu0 0
    %661 = vmatprep.subr.bf16.mxu0 0
    %662 = vmatpush1.bf16.msra.mxu0 0
    %663 = vmatprep.subr.bf16.mxu0 0
    %664 = vmatpush1.bf16.msra.mxu0 0
    %665 = vmatprep.subr.bf16.mxu0 0
    %666 = vmatpush1.bf16.msra.mxu0 0
    %667 = vmatprep.subr.bf16.mxu0 0
    %668 = vmatpush1.bf16.msra.mxu0 0
    %669 = vmatprep.subr.bf16.mxu0 0
    %670 = vmatpush1.bf16.msra.mxu0 0
    %671 = vmatprep.mubr.bf16.mxu0 0
    %672 = vmatmul.mubr.bf16.gmra.mrb[0].mxu0 %v341
    %v673 = vpop.f32.mrb[0].mxu0
    %v674 = vadd.f32 %v394, %v673
    %v675 = vpop.f32.mrb[0].mxu0
    %v676 = vpop.f32.mrb[0].mxu0
    %v677 = vadd.f32 %v394, %v676
    %v678 = vpop.f32.mrb[0].mxu0
    %679 = vmatprep.mubr.bf16.mxu0 0
    %680 = vmatmul.mubr.bf16.gmra.mrb[0].mxu0 %v342
    %v681 = vpop.f32.mrb[0].mxu0
    %v682 = vadd.f32 %v394, %v681
    %v683 = vpop.f32.mrb[0].mxu0
    %v684 = vpop.f32.mrb[0].mxu0
    %v685 = vadd.f32 %v394, %v684
    %v686 = vpop.f32.mrb[0].mxu0
    %687 = vmatprep.mubr.bf16.mxu0 0
    %688 = vmatmul.mubr.bf16.gmra.mrb[0].mxu0 %v343
    %v689 = vpop.f32.mrb[0].mxu0
    %v690 = vadd.f32 %v394, %v689
    %v691 = vpop.f32.mrb[0].mxu0
    %v692 = vpop.f32.mrb[0].mxu0
    %v693 = vadd.f32 %v394, %v692
    %v694 = vpop.f32.mrb[0].mxu0
    %695 = vmatprep.mubr.bf16.mxu0 0
    %696 = vmatmul.mubr.bf16.gmra.mrb[0].mxu0 %v344
    %v697 = vpop.f32.mrb[0].mxu0
    %v698 = vadd.f32 %v394, %v697
    %v699 = vpop.f32.mrb[0].mxu0
    %v700 = vpop.f32.mrb[0].mxu0
    %v701 = vadd.f32 %v394, %v700
    %v702 = vpop.f32.mrb[0].mxu0
    %703 = vmatprep.mubr.bf16.mxu0 0
    %704 = vmatmul.mubr.bf16.gmra.mrb[0].mxu0 %v345
    %v705 = vpop.f32.mrb[0].mxu0
    %v706 = vadd.f32 %v394, %v705
    %v707 = vpop.f32.mrb[0].mxu0
    %v708 = vpop.f32.mrb[0].mxu0
    %v709 = vadd.f32 %v394, %v708
    %v710 = vpop.f32.mrb[0].mxu0
    %711 = vmatprep.mubr.bf16.mxu0 0
    %712 = vmatmul.mubr.bf16.gmra.mrb[0].mxu0 %v346
    %v713 = vpop.f32.mrb[0].mxu0
    %v714 = vadd.f32 %v394, %v713
    %v715 = vpop.f32.mrb[0].mxu0
    %v716 = vpop.f32.mrb[0].mxu0
    %v717 = vadd.f32 %v394, %v716
    %v718 = vpop.f32.mrb[0].mxu0
    %719 = vmatprep.mubr.bf16.mxu0 0
    %720 = vmatmul.mubr.bf16.gmra.mrb[0].mxu0 %v347
    %v721 = vpop.f32.mrb[0].mxu0
    %v722 = vadd.f32 %v394, %v721
    %v723 = vpop.f32.mrb[0].mxu0
    %v724 = vpop.f32.mrb[0].mxu0
    %v725 = vadd.f32 %v394, %v724
    %v726 = vpop.f32.mrb[0].mxu0
    %727 = vmatprep.mubr.bf16.mxu0 0
    %728 = vmatmul.mubr.bf16.gmra.mrb[0].mxu0 %v348
    %v729 = vpop.f32.mrb[0].mxu0
    %v730 = vadd.f32 %v394, %v729
    %v731 = vpop.f32.mrb[0].mxu0
    %v732 = vpop.f32.mrb[0].mxu0
    %v733 = vadd.f32 %v394, %v732
    %v734 = vpop.f32.mrb[0].mxu0
    %735 = vdwg.mxu0
    %v736 = vmul.f32 %v561, 0.125
    %v737 = vmul.f32 %v565, 0.125
    %v738 = vmul.f32 %v571, 0.125
    %v739 = vmul.f32 %v575, 0.125
    %v740 = vmul.f32 %v581, 0.125
    %v741 = vmul.f32 %v585, 0.125
    %v742 = vmul.f32 %v591, 0.125
    %v743 = vmul.f32 %v595, 0.125
    %v744 = vmul.f32 %v601, 0.125
    %v745 = vmul.f32 %v605, 0.125
    %v746 = vmul.f32 %v611, 0.125
    %v747 = vmul.f32 %v615, 0.125
    %v748 = vmul.f32 %v621, 0.125
    %v749 = vmul.f32 %v625, 0.125
    %v750 = vmul.f32 %v631, 0.125
    %v751 = vmul.f32 %v635, 0.125
    %v752 = vpack.c.bf16 %v737, %v736
    %v753 = vpack.c.bf16 %v739, %v738
    %v754 = vpack.c.bf16 %v741, %v740
    %v755 = vpack.c.bf16 %v743, %v742
    %v756 = vpack.c.bf16 %v745, %v744
    %v757 = vpack.c.bf16 %v747, %v746
    %v758 = vpack.c.bf16 %v749, %v748
    %v759 = vpack.c.bf16 %v751, %v750
    %v768 = vunpack.c.l.b16 %v752
    %v769 = vunpack.c.h.b16 %v752
    %v770 = vunpack.c.l.b16 %v753
    %v771 = vunpack.c.h.b16 %v753
    %v772 = vunpack.c.l.b16 %v754
    %v773 = vunpack.c.h.b16 %v754
    %v774 = vunpack.c.l.b16 %v755
    %v775 = vunpack.c.h.b16 %v755
    %v776 = vunpack.c.l.b16 %v756
    %v777 = vunpack.c.h.b16 %v756
    %v778 = vunpack.c.l.b16 %v757
    %v779 = vunpack.c.h.b16 %v757
    %v780 = vunpack.c.l.b16 %v758
    %v781 = vunpack.c.h.b16 %v758
    %v782 = vunpack.c.l.b16 %v759
    %v783 = vunpack.c.h.b16 %v759
    %v784 = vpack.c.b16 %v768, %v768
    %v785 = vpack.c.b16 %v769, %v769
    %v786 = vpack.c.b16 %v770, %v770
    %v787 = vpack.c.b16 %v771, %v771
    %v788 = vpack.c.b16 %v772, %v772
    %v789 = vpack.c.b16 %v773, %v773
    %v790 = vpack.c.b16 %v774, %v774
    %v791 = vpack.c.b16 %v775, %v775
    %v792 = vpack.c.b16 %v776, %v776
    %v793 = vpack.c.b16 %v777, %v777
    %v794 = vpack.c.b16 %v778, %v778
    %v795 = vpack.c.b16 %v779, %v779
    %v796 = vpack.c.b16 %v780, %v780
    %v797 = vpack.c.b16 %v781, %v781
    %v798 = vpack.c.b16 %v782, %v782
    %v799 = vpack.c.b16 %v783, %v783
    %816 = vst [vmem:[#allocation7] sm:$0xf] %v784
    %817 = vst [vmem:[#allocation7 + $0x4] sm:$0xf] %v785
    %818 = vst [vmem:[#allocation7 + $0x8] sm:$0xf] %v786
    %819 = vst [vmem:[#allocation7 + $0xc] sm:$0xf] %v787
    %820 = vst [vmem:[#allocation7 + $0x10] sm:$0xf] %v788
    %821 = vst [vmem:[#allocation7 + $0x14] sm:$0xf] %v789
    %822 = vst [vmem:[#allocation7 + $0x18] sm:$0xf] %v790
    %823 = vst [vmem:[#allocation7 + $0x1c] sm:$0xf] %v791
    %824 = vst [vmem:[#allocation7 + $0x20] sm:$0xf] %v792
    %825 = vst [vmem:[#allocation7 + $0x24] sm:$0xf] %v793
    %826 = vst [vmem:[#allocation7 + $0x28] sm:$0xf] %v794
    %827 = vst [vmem:[#allocation7 + $0x2c] sm:$0xf] %v795
    %828 = vst [vmem:[#allocation7 + $0x30] sm:$0xf] %v796
    %829 = vst [vmem:[#allocation7 + $0x34] sm:$0xf] %v797
    %830 = vst [vmem:[#allocation7 + $0x38] sm:$0xf] %v798
    %831 = vst [vmem:[#allocation7 + $0x3c] sm:$0xf] %v799
    %v832 = vpack.c.bf16 %v567, %v563
    %v833 = vpack.c.bf16 %v577, %v573
    %v834 = vpack.c.bf16 %v587, %v583
    %v835 = vpack.c.bf16 %v597, %v593
    %v836 = vpack.c.bf16 %v607, %v603
    %v837 = vpack.c.bf16 %v617, %v613
    %v838 = vpack.c.bf16 %v627, %v623
    %v839 = vpack.c.bf16 %v637, %v633
    %v848 = vunpack.c.l.b16 %v832
    %v849 = vunpack.c.h.b16 %v832
    %v850 = vunpack.c.l.b16 %v833
    %v851 = vunpack.c.h.b16 %v833
    %v852 = vunpack.c.l.b16 %v834
    %v853 = vunpack.c.h.b16 %v834
    %v854 = vunpack.c.l.b16 %v835
    %v855 = vunpack.c.h.b16 %v835
    %v856 = vunpack.c.l.b16 %v836
    %v857 = vunpack.c.h.b16 %v836
    %v858 = vunpack.c.l.b16 %v837
    %v859 = vunpack.c.h.b16 %v837
    %v860 = vunpack.c.l.b16 %v838
    %v861 = vunpack.c.h.b16 %v838
    %v862 = vunpack.c.l.b16 %v839
    %v863 = vunpack.c.h.b16 %v839
    %v864 = vpack.c.b16 %v848, %v848
    %v865 = vpack.c.b16 %v849, %v849
    %v866 = vpack.c.b16 %v850, %v850
    %v867 = vpack.c.b16 %v851, %v851
    %v868 = vpack.c.b16 %v852, %v852
    %v869 = vpack.c.b16 %v853, %v853
    %v870 = vpack.c.b16 %v854, %v854
    %v871 = vpack.c.b16 %v855, %v855
    %v872 = vpack.c.b16 %v856, %v856
    %v873 = vpack.c.b16 %v857, %v857
    %v874 = vpack.c.b16 %v858, %v858
    %v875 = vpack.c.b16 %v859, %v859
    %v876 = vpack.c.b16 %v860, %v860
    %v877 = vpack.c.b16 %v861, %v861
    %v878 = vpack.c.b16 %v862, %v862
    %v879 = vpack.c.b16 %v863, %v863
    %896 = vst [vmem:[#allocation8] sm:$0xf] %v864
    %897 = vst [vmem:[#allocation8 + $0x4] sm:$0xf] %v865
    %898 = vst [vmem:[#allocation8 + $0x8] sm:$0xf] %v866
    %899 = vst [vmem:[#allocation8 + $0xc] sm:$0xf] %v867
    %900 = vst [vmem:[#allocation8 + $0x10] sm:$0xf] %v868
    %901 = vst [vmem:[#allocation8 + $0x14] sm:$0xf] %v869
    %902 = vst [vmem:[#allocation8 + $0x18] sm:$0xf] %v870
    %903 = vst [vmem:[#allocation8 + $0x1c] sm:$0xf] %v871
    %904 = vst [vmem:[#allocation8 + $0x20] sm:$0xf] %v872
    %905 = vst [vmem:[#allocation8 + $0x24] sm:$0xf] %v873
    %906 = vst [vmem:[#allocation8 + $0x28] sm:$0xf] %v874
    %907 = vst [vmem:[#allocation8 + $0x2c] sm:$0xf] %v875
    %908 = vst [vmem:[#allocation8 + $0x30] sm:$0xf] %v876
    %909 = vst [vmem:[#allocation8 + $0x34] sm:$0xf] %v877
    %910 = vst [vmem:[#allocation8 + $0x38] sm:$0xf] %v878
    %911 = vst [vmem:[#allocation8 + $0x3c] sm:$0xf] %v879
    %v912 = vpack.c.bf16 %v677, %v674
    %v913 = vpack.c.bf16 %v685, %v682
    %v914 = vpack.c.bf16 %v693, %v690
    %v915 = vpack.c.bf16 %v701, %v698
    %v916 = vpack.c.bf16 %v709, %v706
    %v917 = vpack.c.bf16 %v717, %v714
    %v918 = vpack.c.bf16 %v725, %v722
    %v919 = vpack.c.bf16 %v733, %v730
    %v928 = vunpack.c.l.b16 %v912
    %v929 = vunpack.c.h.b16 %v912
    %v930 = vunpack.c.l.b16 %v913
    %v931 = vunpack.c.h.b16 %v913
    %v932 = vunpack.c.l.b16 %v914
    %v933 = vunpack.c.h.b16 %v914
    %v934 = vunpack.c.l.b16 %v915
    %v935 = vunpack.c.h.b16 %v915
    %v936 = vunpack.c.l.b16 %v916
    %v937 = vunpack.c.h.b16 %v916
    %v938 = vunpack.c.l.b16 %v917
    %v939 = vunpack.c.h.b16 %v917
    %v940 = vunpack.c.l.b16 %v918
    %v941 = vunpack.c.h.b16 %v918
    %v942 = vunpack.c.l.b16 %v919
    %v943 = vunpack.c.h.b16 %v919
    %v944 = vpack.c.b16 %v928, %v928
    %v945 = vpack.c.b16 %v929, %v929
    %v946 = vpack.c.b16 %v930, %v930
    %v947 = vpack.c.b16 %v931, %v931
    %v948 = vpack.c.b16 %v932, %v932
    %v949 = vpack.c.b16 %v933, %v933
    %v950 = vpack.c.b16 %v934, %v934
    %v951 = vpack.c.b16 %v935, %v935
    %v952 = vpack.c.b16 %v936, %v936
    %v953 = vpack.c.b16 %v937, %v937
    %v954 = vpack.c.b16 %v938, %v938
    %v955 = vpack.c.b16 %v939, %v939
    %v956 = vpack.c.b16 %v940, %v940
    %v957 = vpack.c.b16 %v941, %v941
    %v958 = vpack.c.b16 %v942, %v942
    %v959 = vpack.c.b16 %v943, %v943
    %976 = vst [vmem:[#allocation10] sm:$0xf] %v944
    %977 = vst [vmem:[#allocation10 + $0x4] sm:$0xf] %v945
    %978 = vst [vmem:[#allocation10 + $0x8] sm:$0xf] %v946
    %979 = vst [vmem:[#allocation10 + $0xc] sm:$0xf] %v947
    %980 = vst [vmem:[#allocation10 + $0x10] sm:$0xf] %v948
    %981 = vst [vmem:[#allocation10 + $0x14] sm:$0xf] %v949
    %982 = vst [vmem:[#allocation10 + $0x18] sm:$0xf] %v950
    %983 = vst [vmem:[#allocation10 + $0x1c] sm:$0xf] %v951
    %984 = vst [vmem:[#allocation10 + $0x20] sm:$0xf] %v952
    %985 = vst [vmem:[#allocation10 + $0x24] sm:$0xf] %v953
    %986 = vst [vmem:[#allocation10 + $0x28] sm:$0xf] %v954
    %987 = vst [vmem:[#allocation10 + $0x2c] sm:$0xf] %v955
    %988 = vst [vmem:[#allocation10 + $0x30] sm:$0xf] %v956
    %989 = vst [vmem:[#allocation10 + $0x34] sm:$0xf] %v957
    %990 = vst [vmem:[#allocation10 + $0x38] sm:$0xf] %v958
    %991 = vst [vmem:[#allocation10 + $0x3c] sm:$0xf] %v959
    // Predicated region
    $region30: #{tpu_custom_call.1} parent=1 // pred_check
      _
    $region31: #{tpu_custom_call.1} parent=1 // pred_check_branch
      %993 = sbr.rel (0) target = $region33
    $region32: #{tpu_custom_call.1} parent=1 // pred_region
      %s995 = ssub.s32 1024, 1024
      %996 = vsyncadd [#allocation4], %s995
      %s997 = sshll.u32 [#allocation7], 4
      %s998 = int_to_ptr.vmem [resolvable:$true] %s997
      %1003 = dma.vmem_to_hbm [thread:$0]  %s998, 1024, %s5, [#allocation4], 64, 64, 4
    $region33: #{tpu_custom_call.1} parent=1 // pred_fallthru
      _
    // Predicated region
    $region34: #{tpu_custom_call.1} parent=1 // pred_check
      _
    $region35: #{tpu_custom_call.1} parent=1 // pred_check_branch
      %1005 = sbr.rel (0) target = $region37
    $region36: #{tpu_custom_call.1} parent=1 // pred_region
      %s1007 = ssub.s32 1024, 1024
      %1008 = vsyncadd [#allocation9], %s1007
      %s1009 = sshll.u32 [#allocation8], 4
      %s1010 = int_to_ptr.vmem [resolvable:$true] %s1009
      %1015 = dma.vmem_to_hbm [thread:$0]  %s1010, 1024, %s6, [#allocation9], 64, 64, 4
    $region37: #{tpu_custom_call.1} parent=1 // pred_fallthru
      _
    // Predicated region
    $region38: #{tpu_custom_call.1} parent=1 // pred_check
      _
    $region39: #{tpu_custom_call.1} parent=1 // pred_check_branch
      %1017 = sbr.rel (0) target = $region41
    $region40: #{tpu_custom_call.1} parent=1 // pred_region
      %s1019 = ssub.s32 1024, 1024
      %1020 = vsyncadd [#allocation9], %s1019
      %s1021 = sshll.u32 [#allocation10], 4
      %s1022 = int_to_ptr.vmem [resolvable:$true] %s1021
      %1027 = dma.vmem_to_hbm [thread:$0]  %s1022, 1024, %s7, [#allocation9], 64, 64, 4
    $region41: #{tpu_custom_call.1} parent=1 // pred_fallthru
      _
    // Predicated region
    $region42: #{tpu_custom_call.1} parent=1 // pred_check
      _
    $region43: #{tpu_custom_call.1} parent=1 // pred_check_branch
      %1029 = sbr.rel (0) target = $region45
    $region44: #{tpu_custom_call.1} parent=1 // pred_region
      %1030 = dma.done [#allocation4], 1024
    $region45: #{tpu_custom_call.1} parent=1 // pred_fallthru
      _
    // Predicated region
    $region46: #{tpu_custom_call.1} parent=1 // pred_check
      _
    $region47: #{tpu_custom_call.1} parent=1 // pred_check_branch
      %1032 = sbr.rel (0) target = $region49
    $region48: #{tpu_custom_call.1} parent=1 // pred_region
      %1033 = dma.done [#allocation9], 1024
    $region49: #{tpu_custom_call.1} parent=1 // pred_fallthru
      _
    // Predicated region
    $region50: #{tpu_custom_call.1} parent=1 // pred_check
      _
    $region51: #{tpu_custom_call.1} parent=1 // pred_check_branch
      %1035 = sbr.rel (0) target = $region53
    $region52: #{tpu_custom_call.1} parent=1 // pred_region
      %1036 = dma.done [#allocation9], 1024
    $region53: #{tpu_custom_call.1} parent=1 // pred_fallthru
      _
    %1037 = vsyncpa [#allocation3], 1
    %1038 = vsyncpa [#allocation6], 1
    %1039 = vsyncpa [#allocation4], 1
    %1040 = vsyncpa [#allocation9], 1

</llo_original>
